<compile_context>
chip_gen: v5e
topology: v5e:2x2
jax: 0.10.0
libtpu: 0.0.40
codegen_flags: <defaults>
</compile_context>

<pallas_src>
import functools
import math

import jax
import jax.numpy as jnp
import numpy as np
from jax import lax
from jax.experimental import pallas as pl
from jax.experimental.pallas import tpu as pltpu


_COORD_D_MAX = 8      # D <= this -> unrolled coordinate path, else Gram/MXU path
_LANES = 128


# ---------------------------------------------------------------------------
# Generation-aware VMEM budgeting (v7x: 64 MiB/core, v5e/v6e: 128 MiB).
# ---------------------------------------------------------------------------
@functools.lru_cache(maxsize=1)
def _vmem_capacity_bytes():
    try:
        info = pltpu.get_tpu_info()
        cap = int(getattr(info, "vmem_capacity_bytes", 0) or 0)
        if cap > 0:
            return cap
    except Exception:
        pass
    return 64 * 1024 * 1024   # v7x per-core capacity: a safe floor everywhere


def _vmem_limit_bytes():
    cap = _vmem_capacity_bytes()
    return max(32 * 1024 * 1024, min(int(cap * 0.85), 112 * 1024 * 1024))


# ---------------------------------------------------------------------------
# Coordinate path: (B, J, D) with tiny D, lane-dense (batch on the 128 lanes).
# ---------------------------------------------------------------------------
def _bone_loss_coord_kernel(o_ref, g_ref, out_ref, *, n_chunks, lanes):
    D, J, _ = o_ref.shape

    def chunk_sum(c, acc):
        off = pl.multiple_of(c * lanes, lanes)
        # Natural-layout (J, lanes) slabs, one per coordinate (D is tiny).
        ojs = [o_ref[d, :, pl.ds(off, lanes)].astype(jnp.float32)
               for d in range(D)]
        gjs = [g_ref[d, :, pl.ds(off, lanes)].astype(jnp.float32)
               for d in range(D)]
        s = jnp.float32(0.0)
        for i in range(J):                       # static unroll over anchor joint
            d2o = jnp.zeros((J, lanes), jnp.float32)
            d2g = jnp.zeros((J, lanes), jnp.float32)
            for d in range(D):                   # static unroll, D <= 8
                # (1, lanes) row i; size-1 sublane broadcast against (J, lanes).
                oi = o_ref[d, pl.ds(i, 1), pl.ds(off, lanes)].astype(jnp.float32)
                gi = g_ref[d, pl.ds(i, 1), pl.ds(off, lanes)].astype(jnp.float32)
                do = oi - ojs[d]
                dg = gi - gjs[d]
                d2o = d2o + do * do
                d2g = d2g + dg * dg
            # Row i of the symmetric |bone_out - bone_gt| matrix (diagonal = 0).
            s = s + jnp.sum(jnp.abs(jnp.sqrt(d2o) - jnp.sqrt(d2g)))
        # Every unordered pair was counted twice (i->j and j->i).
        return acc + 0.5 * s

    total = lax.fori_loop(0, n_chunks, chunk_sum, jnp.float32(0.0), unroll=True)
    out_ref[...] = jnp.broadcast_to(total, out_ref.shape)


def _coord_path(joint_out, joint_gt):
    B, J, D = joint_out.shape
    # Pad batch to full 128-lane tiles: padded rows are all-zero, so their
    # bones are 0 for both pred and gt and they add exactly 0 to the sum.
    B_pad = ((B + _LANES - 1) // _LANES) * _LANES
    n_chunks = B_pad // _LANES
    # Several 128-lane chunks per grid step amortize per-step overhead; keep at
    # least two grid blocks when possible so v7x can shard them across cores.
    cap = 1 if n_chunks < 2 else min(8, max(1, n_chunks // 2))
    chunks_per_block = 1
    for c in range(cap, 0, -1):
        if n_chunks % c == 0:
            chunks_per_block = c
            break
    nb = n_chunks // chunks_per_block
    b_block = chunks_per_block * _LANES

    if B_pad != B:
        pad = ((0, B_pad - B), (0, 0), (0, 0))
        joint_out = jnp.pad(joint_out, pad)
        joint_gt = jnp.pad(joint_gt, pad)
    xo = jnp.transpose(joint_out, (2, 1, 0))      # (D, J, B_pad), batch on lanes
    xg = jnp.transpose(joint_gt, (2, 1, 0))

    kernel = functools.partial(_bone_loss_coord_kernel,
                               n_chunks=chunks_per_block, lanes=_LANES)
    out = pl.pallas_call(
        kernel,
        out_shape=jax.ShapeDtypeStruct((nb, 8, 128), jnp.float32),
        grid_spec=pltpu.PrefetchScalarGridSpec(
            num_scalar_prefetch=0,
            grid=(nb,),
            in_specs=[
                pl.BlockSpec((D, J, b_block), lambda b: (0, 0, b)),
                pl.BlockSpec((D, J, b_block), lambda b: (0, 0, b)),
            ],
            out_specs=pl.BlockSpec((1, 8, 128), lambda b: (b, 0, 0)),
        ),
        compiler_params=pltpu.CompilerParams(
            dimension_semantics=("parallel",),
            vmem_limit_bytes=_vmem_limit_bytes()),
    )(xo, xg)
    return out[:, 0, 0]


# ---------------------------------------------------------------------------
# Gram path: (B, J, D) with large D (flattened heatmaps).  Bone lengths via
# ||x_i - x_j||^2 = G_ii + G_jj - 2*G_ij, with the Gram of (b_tile*J, d_tile)
# row blocks accumulated on the MXU over a tiled D reduction axis.
# ---------------------------------------------------------------------------
def _choose_b_tile(B, J):
    """Rows per block = b_tile * J, targeting ~256 MXU rows; prefer an exact
    divisor of B (no batch padding => no extra HBM copy of the heatmaps)."""
    target = max(1, 256 // J)
    cap = target if B < 2 * target else max(1, min(target, B // 2))
    for b in range(min(cap, B), 0, -1):
        if B % b == 0 and ((b * J) % 8 == 0 or b == B):
            return b, B
    # Rare fallback: pad the batch so the row tile is sublane-aligned.
    unit = 8 // math.gcd(J, 8)
    b = max(unit, (cap // unit) * unit)
    return b, ((B + b - 1) // b) * b


def _choose_d_tile(D, cap):
    cap = max(128, cap)
    if D <= cap:
        return D, D
    t = (cap // 128) * 128
    for cand in range(t, 127, -128):
        if D % cand == 0:
            return cand, D
    # Rare fallback: pad D so the tile divides it (zero columns add 0 to Gram).
    return t, ((D + t - 1) // t) * t


def _bone_loss_gram_kernel(o_ref, g_ref, mask_ref, out_ref, go_ref, gg_ref):
    k = pl.program_id(1)

    @pl.when(k == 0)
    def _init():
        go_ref[...] = jnp.zeros_like(go_ref)
        gg_ref[...] = jnp.zeros_like(gg_ref)

    dims = (((1,), (1,)), ((), ()))                # x @ x.T on the MXU
    xo = o_ref[...]                                # (R, Dt) in the native dtype
    xg = g_ref[...]
    go_ref[...] += lax.dot_general(xo, xo, dims,
                                   preferred_element_type=jnp.float32)
    gg_ref[...] += lax.dot_general(xg, xg, dims,
                                   preferred_element_type=jnp.float32)

    @pl.when(k == pl.num_programs(1) - 1)
    def _finalize():
        # TODO(synk): for nearly identical heatmaps the Gram identity amplifies
        # accumulation rounding (catastrophic cancellation); switch those pairs
        # to an explicit-difference pass if that regime matters.
        go = go_ref[...]                           # (R, R) f32
        gg = gg_ref[...]
        R = go.shape[0]
        rows = lax.broadcasted_iota(jnp.int32, (R, R), 0)
        cols = lax.broadcasted_iota(jnp.int32, (R, R), 1)
        eye = (rows == cols).astype(jnp.float32)
        diag_o = go * eye                          # Gram diagonal, reused twice
        diag_g = gg * eye
        no_i = jnp.sum(diag_o, axis=1, keepdims=True)    # (R, 1)  ||x_i||^2
        no_j = jnp.sum(diag_o, axis=0, keepdims=True)    # (1, R)  ||x_j||^2
        ng_i = jnp.sum(diag_g, axis=1, keepdims=True)
        ng_j = jnp.sum(diag_g, axis=0, keepdims=True)
        d2o = jnp.maximum(no_i + no_j - 2.0 * go, 0.0)   # clamp: no sqrt(-eps)
        d2g = jnp.maximum(ng_i + ng_j - 2.0 * gg, 0.0)
        loss = jnp.abs(jnp.sqrt(d2o) - jnp.sqrt(d2g)) * mask_ref[...]
        out_ref[...] = jnp.broadcast_to(jnp.sum(loss), out_ref.shape)


def _gram_path(joint_out, joint_gt):
    B, J, D = joint_out.shape
    itemsize = jnp.dtype(joint_out.dtype).itemsize
    vmem_limit = _vmem_limit_bytes()
    budget = int(vmem_limit * 0.6)                 # headroom below the limit

    b_tile, B_pad = _choose_b_tile(B, J)
    r_tile = b_tile * J
    # Fixed VMEM: 2 f32 Gram accumulators + double-buffered f32 pair mask.
    fixed = 4 * r_tile * r_tile * 4
    d_cap = max(128, (budget - fixed) // (4 * r_tile * itemsize))
    d_tile, D_pad = _choose_d_tile(D, d_cap)

    if B_pad != B or D_pad != D:
        pad = ((0, B_pad - B), (0, 0), (0, D_pad - D))
        joint_out = jnp.pad(joint_out, pad)
        joint_gt = jnp.pad(joint_gt, pad)
    xo = joint_out.reshape(B_pad * J, D_pad)       # free reshape: row = (b, j)
    xg = joint_gt.reshape(B_pad * J, D_pad)

    nb = (B_pad * J) // r_tile
    nk = D_pad // d_tile

    # Within-batch upper-triangle pair mask; identical for every batch block
    # (r_tile is always an exact multiple of J).
    rr = np.arange(r_tile)
    mask_np = (((rr[:, None] // J) == (rr[None, :] // J))
               & (rr[:, None] < rr[None, :])).astype(np.float32)
    mask = jnp.asarray(mask_np)

    out = pl.pallas_call(
        _bone_loss_gram_kernel,
        out_shape=jax.ShapeDtypeStruct((nb, 8, 128), jnp.float32),
        grid_spec=pltpu.PrefetchScalarGridSpec(
            num_scalar_prefetch=0,
            grid=(nb, nk),
            in_specs=[
                pl.BlockSpec((r_tile, d_tile), lambda b, k: (b, k)),
                pl.BlockSpec((r_tile, d_tile), lambda b, k: (b, k)),
                pl.BlockSpec((r_tile, r_tile), lambda b, k: (0, 0)),
            ],
            out_specs=pl.BlockSpec((1, 8, 128), lambda b, k: (b, 0, 0)),
            scratch_shapes=[
                pltpu.VMEM((r_tile, r_tile), jnp.float32),
                pltpu.VMEM((r_tile, r_tile), jnp.float32),
            ],
        ),
        compiler_params=pltpu.CompilerParams(
            dimension_semantics=("parallel", "arbitrary"),
            vmem_limit_bytes=vmem_limit),
    )(xo, xg, mask)
    return out[:, 0, 0]


# ---------------------------------------------------------------------------
# Public wrapper (matches JointBoneLoss.forward semantics).
# ---------------------------------------------------------------------------
@functools.partial(jax.jit, static_argnums=2)
def joint_bone_loss(joint_out, joint_gt, joint_num):
    assert joint_out.shape == joint_gt.shape
    if joint_out.ndim == 4:
        # L2 over dims [2, 3] == L2 over the flattened last dim
        B, J, H, W = joint_out.shape
        joint_out = joint_out.reshape(B, J, H * W)
        joint_gt = joint_gt.reshape(B, J, H * W)
    assert joint_out.ndim == 3, "expected (B, J, D) or (B, J, H, W)"
    B, J, D = joint_out.shape
    assert J == joint_num
    num_pairs = joint_num * (joint_num - 1) // 2
    if D <= _COORD_D_MAX:
        partials = _coord_path(joint_out, joint_gt)
    else:
        partials = _gram_path(joint_out, joint_gt)
    return jnp.sum(partials) / float(B * num_pairs)


class JointBoneLoss:
    def __init__(self, joint_num):
        self.joint_num = joint_num

    def __call__(self, joint_out, joint_gt):
        return joint_bone_loss(joint_out, joint_gt, self.joint_num)


def joint_bone_loss_ref(joint_out, joint_gt, joint_num):
    """Pure-JAX reference mirroring the PyTorch module."""
    id_i, id_j = [], []
    for i in range(joint_num):
        for j in range(i + 1, joint_num):
            id_i.append(i)
            id_j.append(j)
    id_i = np.asarray(id_i, dtype=np.int32)
    id_j = np.asarray(id_j, dtype=np.int32)
    calc_dim = (2, 3) if joint_out.ndim == 4 else -1
    J = jnp.sqrt(jnp.sum(
        (joint_out[:, id_i, ...] - joint_out[:, id_j, ...]) ** 2, axis=calc_dim))
    Y = jnp.sqrt(jnp.sum(
        (joint_gt[:, id_i, ...] - joint_gt[:, id_j, ...]) ** 2, axis=calc_dim))
    return jnp.mean(jnp.abs(J - Y))


if __name__ == "__main__":
    key = jax.random.PRNGKey(0)
    k1, k2, k3, k4 = jax.random.split(key, 4)

    joint_num = 8            # -> 28 joint pairs
    loss_fn = JointBoneLoss(joint_num)

    # --- 3-D coordinate case: (B, J, 3), f32, coordinate kernel ------------
    jo3 = jax.random.normal(k1, (2, joint_num, 3), dtype=jnp.float32)
    jg3 = jax.random.normal(k2, (2, joint_num, 3), dtype=jnp.float32)
    loss3 = jax.block_until_ready(loss_fn(jo3, jg3))
    ref3 = joint_bone_loss_ref(jo3, jg3, joint_num)
    assert np.allclose(np.asarray(loss3), np.asarray(ref3), rtol=1e-5, atol=1e-6), (
        f"3-D mismatch: pallas={float(loss3)} ref={float(ref3)}")

    # --- 4-D heatmap case: (B, J, H, W), bf16 in / f32 accumulate ----------
    # D = 64*64 = 4096 -> Gram kernel, (B*J, D) rows on the MXU.
    jo4 = jax.random.normal(k3, (2, joint_num, 64, 64), dtype=jnp.float32).astype(jnp.bfloat16)
    jg4 = jax.random.normal(k4, (2, joint_num, 64, 64), dtype=jnp.float32).astype(jnp.bfloat16)
    loss4 = jax.block_until_ready(loss_fn(jo4, jg4))
    ref4 = joint_bone_loss_ref(jo4.astype(jnp.float32), jg4.astype(jnp.float32),
                               joint_num)
    assert np.allclose(np.asarray(loss4), np.asarray(ref4), rtol=2e-3, atol=1e-3), (
        f"4-D mismatch: pallas={float(loss4)} ref={float(ref4)}")

    print("KERNEL_OK")
</pallas_src>

<mosaic_0001>
module attributes {stable_mosaic.version = 11 : i64} {
  func.func @_bone_loss_coord_kernel(%arg0: i32, %arg1: memref<3x8x128xf32, #tpu.memory_space<vmem>>, %arg2: memref<3x8x128xf32, #tpu.memory_space<vmem>>, %arg3: memref<1x8x128xf32, #tpu.memory_space<vmem>>) attributes {dimension_semantics = [#tpu.dimension_semantics<parallel>], iteration_bounds = array<i64: 1>, scalar_prefetch = 0 : i64, scratch_operands = 0 : i64, tpu.core_type = #tpu.core_type<tc>, window_params = [{transform_indices = @transform_0, window_bounds = array<i64: 3, 8, 128>}, {transform_indices = @transform_1, window_bounds = array<i64: 3, 8, 128>}, {transform_indices = @transform_2, window_bounds = array<i64: 1, 8, 128>}]} {
    %cst = arith.constant 0.000000e+00 : f32
    %c0_i32 = arith.constant 0 : i32
    %c128_i32 = arith.constant 128 : i32
    %0 = arith.muli %c0_i32, %c128_i32 : i32
    %1 = tpu.assume_multiple %0, 128 : i32
    %c0 = arith.constant 0 : index
    %c0_0 = arith.constant 0 : index
    %2 = arith.index_cast %1 : i32 to index
    %3 = vector.load %arg1[%c0, %c0_0, %2] : memref<3x8x128xf32, #tpu.memory_space<vmem>>, vector<1x8x128xf32>
    %4 = vector.shape_cast %3 : vector<1x8x128xf32> to vector<8x128xf32>
    %c1 = arith.constant 1 : index
    %c0_1 = arith.constant 0 : index
    %5 = arith.index_cast %1 : i32 to index
    %6 = vector.load %arg1[%c1, %c0_1, %5] : memref<3x8x128xf32, #tpu.memory_space<vmem>>, vector<1x8x128xf32>
    %7 = vector.shape_cast %6 : vector<1x8x128xf32> to vector<8x128xf32>
    %c2 = arith.constant 2 : index
    %c0_2 = arith.constant 0 : index
    %8 = arith.index_cast %1 : i32 to index
    %9 = vector.load %arg1[%c2, %c0_2, %8] : memref<3x8x128xf32, #tpu.memory_space<vmem>>, vector<1x8x128xf32>
    %10 = vector.shape_cast %9 : vector<1x8x128xf32> to vector<8x128xf32>
    %c0_3 = arith.constant 0 : index
    %c0_4 = arith.constant 0 : index
    %11 = arith.index_cast %1 : i32 to index
    %12 = vector.load %arg2[%c0_3, %c0_4, %11] : memref<3x8x128xf32, #tpu.memory_space<vmem>>, vector<1x8x128xf32>
    %13 = vector.shape_cast %12 : vector<1x8x128xf32> to vector<8x128xf32>
    %c1_5 = arith.constant 1 : index
    %c0_6 = arith.constant 0 : index
    %14 = arith.index_cast %1 : i32 to index
    %15 = vector.load %arg2[%c1_5, %c0_6, %14] : memref<3x8x128xf32, #tpu.memory_space<vmem>>, vector<1x8x128xf32>
    %16 = vector.shape_cast %15 : vector<1x8x128xf32> to vector<8x128xf32>
    %c2_7 = arith.constant 2 : index
    %c0_8 = arith.constant 0 : index
    %17 = arith.index_cast %1 : i32 to index
    %18 = vector.load %arg2[%c2_7, %c0_8, %17] : memref<3x8x128xf32, #tpu.memory_space<vmem>>, vector<1x8x128xf32>
    %19 = vector.shape_cast %18 : vector<1x8x128xf32> to vector<8x128xf32>
    %cst_9 = arith.constant 0.000000e+00 : f32
    %20 = vector.broadcast %cst_9 : f32 to vector<8x128xf32>
    %cst_10 = arith.constant 0.000000e+00 : f32
    %21 = vector.broadcast %cst_10 : f32 to vector<8x128xf32>
    %c0_11 = arith.constant 0 : index
    %c0_12 = arith.constant 0 : index
    %22 = arith.index_cast %1 : i32 to index
    %23 = vector.load %arg1[%c0_11, %c0_12, %22] : memref<3x8x128xf32, #tpu.memory_space<vmem>>, vector<1x1x128xf32>
    %24 = vector.shape_cast %23 : vector<1x1x128xf32> to vector<1x128xf32>
    %c0_13 = arith.constant 0 : index
    %c0_14 = arith.constant 0 : index
    %25 = arith.index_cast %1 : i32 to index
    %26 = vector.load %arg2[%c0_13, %c0_14, %25] : memref<3x8x128xf32, #tpu.memory_space<vmem>>, vector<1x1x128xf32>
    %27 = vector.shape_cast %26 : vector<1x1x128xf32> to vector<1x128xf32>
    %28 = vector.broadcast %24 : vector<1x128xf32> to vector<8x128xf32>
    %29 = arith.subf %28, %4 : vector<8x128xf32>
    %30 = vector.broadcast %27 : vector<1x128xf32> to vector<8x128xf32>
    %31 = arith.subf %30, %13 : vector<8x128xf32>
    %32 = arith.mulf %29, %29 : vector<8x128xf32>
    %33 = arith.addf %20, %32 : vector<8x128xf32>
    %34 = arith.mulf %31, %31 : vector<8x128xf32>
    %35 = arith.addf %21, %34 : vector<8x128xf32>
    %c1_15 = arith.constant 1 : index
    %c0_16 = arith.constant 0 : index
    %36 = arith.index_cast %1 : i32 to index
    %37 = vector.load %arg1[%c1_15, %c0_16, %36] : memref<3x8x128xf32, #tpu.memory_space<vmem>>, vector<1x1x128xf32>
    %38 = vector.shape_cast %37 : vector<1x1x128xf32> to vector<1x128xf32>
    %c1_17 = arith.constant 1 : index
    %c0_18 = arith.constant 0 : index
    %39 = arith.index_cast %1 : i32 to index
    %40 = vector.load %arg2[%c1_17, %c0_18, %39] : memref<3x8x128xf32, #tpu.memory_space<vmem>>, vector<1x1x128xf32>
    %41 = vector.shape_cast %40 : vector<1x1x128xf32> to vector<1x128xf32>
    %42 = vector.broadcast %38 : vector<1x128xf32> to vector<8x128xf32>
    %43 = arith.subf %42, %7 : vector<8x128xf32>
    %44 = vector.broadcast %41 : vector<1x128xf32> to vector<8x128xf32>
    %45 = arith.subf %44, %16 : vector<8x128xf32>
    %46 = arith.mulf %43, %43 : vector<8x128xf32>
    %47 = arith.addf %33, %46 : vector<8x128xf32>
    %48 = arith.mulf %45, %45 : vector<8x128xf32>
    %49 = arith.addf %35, %48 : vector<8x128xf32>
    %c2_19 = arith.constant 2 : index
    %c0_20 = arith.constant 0 : index
    %50 = arith.index_cast %1 : i32 to index
    %51 = vector.load %arg1[%c2_19, %c0_20, %50] : memref<3x8x128xf32, #tpu.memory_space<vmem>>, vector<1x1x128xf32>
    %52 = vector.shape_cast %51 : vector<1x1x128xf32> to vector<1x128xf32>
    %c2_21 = arith.constant 2 : index
    %c0_22 = arith.constant 0 : index
    %53 = arith.index_cast %1 : i32 to index
    %54 = vector.load %arg2[%c2_21, %c0_22, %53] : memref<3x8x128xf32, #tpu.memory_space<vmem>>, vector<1x1x128xf32>
    %55 = vector.shape_cast %54 : vector<1x1x128xf32> to vector<1x128xf32>
    %56 = vector.broadcast %52 : vector<1x128xf32> to vector<8x128xf32>
    %57 = arith.subf %56, %10 : vector<8x128xf32>
    %58 = vector.broadcast %55 : vector<1x128xf32> to vector<8x128xf32>
    %59 = arith.subf %58, %19 : vector<8x128xf32>
    %60 = arith.mulf %57, %57 : vector<8x128xf32>
    %61 = arith.addf %47, %60 : vector<8x128xf32>
    %62 = arith.mulf %59, %59 : vector<8x128xf32>
    %63 = arith.addf %49, %62 : vector<8x128xf32>
    %64 = math.sqrt %61 : vector<8x128xf32>
    %65 = math.sqrt %63 : vector<8x128xf32>
    %66 = arith.subf %64, %65 : vector<8x128xf32>
    %67 = math.absf %66 : vector<8x128xf32>
    %68 = vector.shape_cast %67 : vector<8x128xf32> to vector<1x8x128xf32>
    %cst_23 = arith.constant dense<0.000000e+00> : vector<1xf32>
    %69 = vector.multi_reduction <add>, %68, %cst_23 [1, 2] : vector<1x8x128xf32> to vector<1xf32>
    %70 = vector.shape_cast %69 : vector<1xf32> to vector<1x1x1xf32>
    %71 = vector.extract %70[0, 0, 0] : f32 from vector<1x1x1xf32>
    %cst_24 = arith.constant 0.000000e+00 : f32
    %72 = arith.addf %cst_24, %71 : f32
    %cst_25 = arith.constant 0.000000e+00 : f32
    %73 = vector.broadcast %cst_25 : f32 to vector<8x128xf32>
    %cst_26 = arith.constant 0.000000e+00 : f32
    %74 = vector.broadcast %cst_26 : f32 to vector<8x128xf32>
    %c0_27 = arith.constant 0 : index
    %c1_28 = arith.constant 1 : index
    %75 = arith.index_cast %1 : i32 to index
    %76 = vector.load %arg1[%c0_27, %c1_28, %75] : memref<3x8x128xf32, #tpu.memory_space<vmem>>, vector<1x1x128xf32>
    %77 = vector.shape_cast %76 : vector<1x1x128xf32> to vector<1x128xf32>
    %c0_29 = arith.constant 0 : index
    %c1_30 = arith.constant 1 : index
    %78 = arith.index_cast %1 : i32 to index
    %79 = vector.load %arg2[%c0_29, %c1_30, %78] : memref<3x8x128xf32, #tpu.memory_space<vmem>>, vector<1x1x128xf32>
    %80 = vector.shape_cast %79 : vector<1x1x128xf32> to vector<1x128xf32>
    %81 = vector.broadcast %77 : vector<1x128xf32> to vector<8x128xf32>
    %82 = arith.subf %81, %4 : vector<8x128xf32>
    %83 = vector.broadcast %80 : vector<1x128xf32> to vector<8x128xf32>
    %84 = arith.subf %83, %13 : vector<8x128xf32>
    %85 = arith.mulf %82, %82 : vector<8x128xf32>
    %86 = arith.addf %73, %85 : vector<8x128xf32>
    %87 = arith.mulf %84, %84 : vector<8x128xf32>
    %88 = arith.addf %74, %87 : vector<8x128xf32>
    %c1_31 = arith.constant 1 : index
    %c1_32 = arith.constant 1 : index
    %89 = arith.index_cast %1 : i32 to index
    %90 = vector.load %arg1[%c1_31, %c1_32, %89] : memref<3x8x128xf32, #tpu.memory_space<vmem>>, vector<1x1x128xf32>
    %91 = vector.shape_cast %90 : vector<1x1x128xf32> to vector<1x128xf32>
    %c1_33 = arith.constant 1 : index
    %c1_34 = arith.constant 1 : index
    %92 = arith.index_cast %1 : i32 to index
    %93 = vector.load %arg2[%c1_33, %c1_34, %92] : memref<3x8x128xf32, #tpu.memory_space<vmem>>, vector<1x1x128xf32>
    %94 = vector.shape_cast %93 : vector<1x1x128xf32> to vector<1x128xf32>
    %95 = vector.broadcast %91 : vector<1x128xf32> to vector<8x128xf32>
    %96 = arith.subf %95, %7 : vector<8x128xf32>
    %97 = vector.broadcast %94 : vector<1x128xf32> to vector<8x128xf32>
    %98 = arith.subf %97, %16 : vector<8x128xf32>
    %99 = arith.mulf %96, %96 : vector<8x128xf32>
    %100 = arith.addf %86, %99 : vector<8x128xf32>
    %101 = arith.mulf %98, %98 : vector<8x128xf32>
    %102 = arith.addf %88, %101 : vector<8x128xf32>
    %c2_35 = arith.constant 2 : index
    %c1_36 = arith.constant 1 : index
    %103 = arith.index_cast %1 : i32 to index
    %104 = vector.load %arg1[%c2_35, %c1_36, %103] : memref<3x8x128xf32, #tpu.memory_space<vmem>>, vector<1x1x128xf32>
    %105 = vector.shape_cast %104 : vector<1x1x128xf32> to vector<1x128xf32>
    %c2_37 = arith.constant 2 : index
    %c1_38 = arith.constant 1 : index
    %106 = arith.index_cast %1 : i32 to index
    %107 = vector.load %arg2[%c2_37, %c1_38, %106] : memref<3x8x128xf32, #tpu.memory_space<vmem>>, vector<1x1x128xf32>
    %108 = vector.shape_cast %107 : vector<1x1x128xf32> to vector<1x128xf32>
    %109 = vector.broadcast %105 : vector<1x128xf32> to vector<8x128xf32>
    %110 = arith.subf %109, %10 : vector<8x128xf32>
    %111 = vector.broadcast %108 : vector<1x128xf32> to vector<8x128xf32>
    %112 = arith.subf %111, %19 : vector<8x128xf32>
    %113 = arith.mulf %110, %110 : vector<8x128xf32>
    %114 = arith.addf %100, %113 : vector<8x128xf32>
    %115 = arith.mulf %112, %112 : vector<8x128xf32>
    %116 = arith.addf %102, %115 : vector<8x128xf32>
    %117 = math.sqrt %114 : vector<8x128xf32>
    %118 = math.sqrt %116 : vector<8x128xf32>
    %119 = arith.subf %117, %118 : vector<8x128xf32>
    %120 = math.absf %119 : vector<8x128xf32>
    %121 = vector.shape_cast %120 : vector<8x128xf32> to vector<1x8x128xf32>
    %cst_39 = arith.constant dense<0.000000e+00> : vector<1xf32>
    %122 = vector.multi_reduction <add>, %121, %cst_39 [1, 2] : vector<1x8x128xf32> to vector<1xf32>
    %123 = vector.shape_cast %122 : vector<1xf32> to vector<1x1x1xf32>
    %124 = vector.extract %123[0, 0, 0] : f32 from vector<1x1x1xf32>
    %125 = arith.addf %72, %124 : f32
    %cst_40 = arith.constant 0.000000e+00 : f32
    %126 = vector.broadcast %cst_40 : f32 to vector<8x128xf32>
    %cst_41 = arith.constant 0.000000e+00 : f32
    %127 = vector.broadcast %cst_41 : f32 to vector<8x128xf32>
    %c0_42 = arith.constant 0 : index
    %c2_43 = arith.constant 2 : index
    %128 = arith.index_cast %1 : i32 to index
    %129 = vector.load %arg1[%c0_42, %c2_43, %128] : memref<3x8x128xf32, #tpu.memory_space<vmem>>, vector<1x1x128xf32>
    %130 = vector.shape_cast %129 : vector<1x1x128xf32> to vector<1x128xf32>
    %c0_44 = arith.constant 0 : index
    %c2_45 = arith.constant 2 : index
    %131 = arith.index_cast %1 : i32 to index
    %132 = vector.load %arg2[%c0_44, %c2_45, %131] : memref<3x8x128xf32, #tpu.memory_space<vmem>>, vector<1x1x128xf32>
    %133 = vector.shape_cast %132 : vector<1x1x128xf32> to vector<1x128xf32>
    %134 = vector.broadcast %130 : vector<1x128xf32> to vector<8x128xf32>
    %135 = arith.subf %134, %4 : vector<8x128xf32>
    %136 = vector.broadcast %133 : vector<1x128xf32> to vector<8x128xf32>
    %137 = arith.subf %136, %13 : vector<8x128xf32>
    %138 = arith.mulf %135, %135 : vector<8x128xf32>
    %139 = arith.addf %126, %138 : vector<8x128xf32>
    %140 = arith.mulf %137, %137 : vector<8x128xf32>
    %141 = arith.addf %127, %140 : vector<8x128xf32>
    %c1_46 = arith.constant 1 : index
    %c2_47 = arith.constant 2 : index
    %142 = arith.index_cast %1 : i32 to index
    %143 = vector.load %arg1[%c1_46, %c2_47, %142] : memref<3x8x128xf32, #tpu.memory_space<vmem>>, vector<1x1x128xf32>
    %144 = vector.shape_cast %143 : vector<1x1x128xf32> to vector<1x128xf32>
    %c1_48 = arith.constant 1 : index
    %c2_49 = arith.constant 2 : index
    %145 = arith.index_cast %1 : i32 to index
    %146 = vector.load %arg2[%c1_48, %c2_49, %145] : memref<3x8x128xf32, #tpu.memory_space<vmem>>, vector<1x1x128xf32>
    %147 = vector.shape_cast %146 : vector<1x1x128xf32> to vector<1x128xf32>
    %148 = vector.broadcast %144 : vector<1x128xf32> to vector<8x128xf32>
    %149 = arith.subf %148, %7 : vector<8x128xf32>
    %150 = vector.broadcast %147 : vector<1x128xf32> to vector<8x128xf32>
    %151 = arith.subf %150, %16 : vector<8x128xf32>
    %152 = arith.mulf %149, %149 : vector<8x128xf32>
    %153 = arith.addf %139, %152 : vector<8x128xf32>
    %154 = arith.mulf %151, %151 : vector<8x128xf32>
    %155 = arith.addf %141, %154 : vector<8x128xf32>
    %c2_50 = arith.constant 2 : index
    %c2_51 = arith.constant 2 : index
    %156 = arith.index_cast %1 : i32 to index
    %157 = vector.load %arg1[%c2_50, %c2_51, %156] : memref<3x8x128xf32, #tpu.memory_space<vmem>>, vector<1x1x128xf32>
    %158 = vector.shape_cast %157 : vector<1x1x128xf32> to vector<1x128xf32>
    %c2_52 = arith.constant 2 : index
    %c2_53 = arith.constant 2 : index
    %159 = arith.index_cast %1 : i32 to index
    %160 = vector.load %arg2[%c2_52, %c2_53, %159] : memref<3x8x128xf32, #tpu.memory_space<vmem>>, vector<1x1x128xf32>
    %161 = vector.shape_cast %160 : vector<1x1x128xf32> to vector<1x128xf32>
    %162 = vector.broadcast %158 : vector<1x128xf32> to vector<8x128xf32>
    %163 = arith.subf %162, %10 : vector<8x128xf32>
    %164 = vector.broadcast %161 : vector<1x128xf32> to vector<8x128xf32>
    %165 = arith.subf %164, %19 : vector<8x128xf32>
    %166 = arith.mulf %163, %163 : vector<8x128xf32>
    %167 = arith.addf %153, %166 : vector<8x128xf32>
    %168 = arith.mulf %165, %165 : vector<8x128xf32>
    %169 = arith.addf %155, %168 : vector<8x128xf32>
    %170 = math.sqrt %167 : vector<8x128xf32>
    %171 = math.sqrt %169 : vector<8x128xf32>
    %172 = arith.subf %170, %171 : vector<8x128xf32>
    %173 = math.absf %172 : vector<8x128xf32>
    %174 = vector.shape_cast %173 : vector<8x128xf32> to vector<1x8x128xf32>
    %cst_54 = arith.constant dense<0.000000e+00> : vector<1xf32>
    %175 = vector.multi_reduction <add>, %174, %cst_54 [1, 2] : vector<1x8x128xf32> to vector<1xf32>
    %176 = vector.shape_cast %175 : vector<1xf32> to vector<1x1x1xf32>
    %177 = vector.extract %176[0, 0, 0] : f32 from vector<1x1x1xf32>
    %178 = arith.addf %125, %177 : f32
    %cst_55 = arith.constant 0.000000e+00 : f32
    %179 = vector.broadcast %cst_55 : f32 to vector<8x128xf32>
    %cst_56 = arith.constant 0.000000e+00 : f32
    %180 = vector.broadcast %cst_56 : f32 to vector<8x128xf32>
    %c0_57 = arith.constant 0 : index
    %c3 = arith.constant 3 : index
    %181 = arith.index_cast %1 : i32 to index
    %182 = vector.load %arg1[%c0_57, %c3, %181] : memref<3x8x128xf32, #tpu.memory_space<vmem>>, vector<1x1x128xf32>
    %183 = vector.shape_cast %182 : vector<1x1x128xf32> to vector<1x128xf32>
    %c0_58 = arith.constant 0 : index
    %c3_59 = arith.constant 3 : index
    %184 = arith.index_cast %1 : i32 to index
    %185 = vector.load %arg2[%c0_58, %c3_59, %184] : memref<3x8x128xf32, #tpu.memory_space<vmem>>, vector<1x1x128xf32>
    %186 = vector.shape_cast %185 : vector<1x1x128xf32> to vector<1x128xf32>
    %187 = vector.broadcast %183 : vector<1x128xf32> to vector<8x128xf32>
    %188 = arith.subf %187, %4 : vector<8x128xf32>
    %189 = vector.broadcast %186 : vector<1x128xf32> to vector<8x128xf32>
    %190 = arith.subf %189, %13 : vector<8x128xf32>
    %191 = arith.mulf %188, %188 : vector<8x128xf32>
    %192 = arith.addf %179, %191 : vector<8x128xf32>
    %193 = arith.mulf %190, %190 : vector<8x128xf32>
    %194 = arith.addf %180, %193 : vector<8x128xf32>
    %c1_60 = arith.constant 1 : index
    %c3_61 = arith.constant 3 : index
    %195 = arith.index_cast %1 : i32 to index
    %196 = vector.load %arg1[%c1_60, %c3_61, %195] : memref<3x8x128xf32, #tpu.memory_space<vmem>>, vector<1x1x128xf32>
    %197 = vector.shape_cast %196 : vector<1x1x128xf32> to vector<1x128xf32>
    %c1_62 = arith.constant 1 : index
    %c3_63 = arith.constant 3 : index
    %198 = arith.index_cast %1 : i32 to index
    %199 = vector.load %arg2[%c1_62, %c3_63, %198] : memref<3x8x128xf32, #tpu.memory_space<vmem>>, vector<1x1x128xf32>
    %200 = vector.shape_cast %199 : vector<1x1x128xf32> to vector<1x128xf32>
    %201 = vector.broadcast %197 : vector<1x128xf32> to vector<8x128xf32>
    %202 = arith.subf %201, %7 : vector<8x128xf32>
    %203 = vector.broadcast %200 : vector<1x128xf32> to vector<8x128xf32>
    %204 = arith.subf %203, %16 : vector<8x128xf32>
    %205 = arith.mulf %202, %202 : vector<8x128xf32>
    %206 = arith.addf %192, %205 : vector<8x128xf32>
    %207 = arith.mulf %204, %204 : vector<8x128xf32>
    %208 = arith.addf %194, %207 : vector<8x128xf32>
    %c2_64 = arith.constant 2 : index
    %c3_65 = arith.constant 3 : index
    %209 = arith.index_cast %1 : i32 to index
    %210 = vector.load %arg1[%c2_64, %c3_65, %209] : memref<3x8x128xf32, #tpu.memory_space<vmem>>, vector<1x1x128xf32>
    %211 = vector.shape_cast %210 : vector<1x1x128xf32> to vector<1x128xf32>
    %c2_66 = arith.constant 2 : index
    %c3_67 = arith.constant 3 : index
    %212 = arith.index_cast %1 : i32 to index
    %213 = vector.load %arg2[%c2_66, %c3_67, %212] : memref<3x8x128xf32, #tpu.memory_space<vmem>>, vector<1x1x128xf32>
    %214 = vector.shape_cast %213 : vector<1x1x128xf32> to vector<1x128xf32>
    %215 = vector.broadcast %211 : vector<1x128xf32> to vector<8x128xf32>
    %216 = arith.subf %215, %10 : vector<8x128xf32>
    %217 = vector.broadcast %214 : vector<1x128xf32> to vector<8x128xf32>
    %218 = arith.subf %217, %19 : vector<8x128xf32>
    %219 = arith.mulf %216, %216 : vector<8x128xf32>
    %220 = arith.addf %206, %219 : vector<8x128xf32>
    %221 = arith.mulf %218, %218 : vector<8x128xf32>
    %222 = arith.addf %208, %221 : vector<8x128xf32>
    %223 = math.sqrt %220 : vector<8x128xf32>
    %224 = math.sqrt %222 : vector<8x128xf32>
    %225 = arith.subf %223, %224 : vector<8x128xf32>
    %226 = math.absf %225 : vector<8x128xf32>
    %227 = vector.shape_cast %226 : vector<8x128xf32> to vector<1x8x128xf32>
    %cst_68 = arith.constant dense<0.000000e+00> : vector<1xf32>
    %228 = vector.multi_reduction <add>, %227, %cst_68 [1, 2] : vector<1x8x128xf32> to vector<1xf32>
    %229 = vector.shape_cast %228 : vector<1xf32> to vector<1x1x1xf32>
    %230 = vector.extract %229[0, 0, 0] : f32 from vector<1x1x1xf32>
    %231 = arith.addf %178, %230 : f32
    %cst_69 = arith.constant 0.000000e+00 : f32
    %232 = vector.broadcast %cst_69 : f32 to vector<8x128xf32>
    %cst_70 = arith.constant 0.000000e+00 : f32
    %233 = vector.broadcast %cst_70 : f32 to vector<8x128xf32>
    %c0_71 = arith.constant 0 : index
    %c4 = arith.constant 4 : index
    %234 = arith.index_cast %1 : i32 to index
    %235 = vector.load %arg1[%c0_71, %c4, %234] : memref<3x8x128xf32, #tpu.memory_space<vmem>>, vector<1x1x128xf32>
    %236 = vector.shape_cast %235 : vector<1x1x128xf32> to vector<1x128xf32>
    %c0_72 = arith.constant 0 : index
    %c4_73 = arith.constant 4 : index
    %237 = arith.index_cast %1 : i32 to index
    %238 = vector.load %arg2[%c0_72, %c4_73, %237] : memref<3x8x128xf32, #tpu.memory_space<vmem>>, vector<1x1x128xf32>
    %239 = vector.shape_cast %238 : vector<1x1x128xf32> to vector<1x128xf32>
    %240 = vector.broadcast %236 : vector<1x128xf32> to vector<8x128xf32>
    %241 = arith.subf %240, %4 : vector<8x128xf32>
    %242 = vector.broadcast %239 : vector<1x128xf32> to vector<8x128xf32>
    %243 = arith.subf %242, %13 : vector<8x128xf32>
    %244 = arith.mulf %241, %241 : vector<8x128xf32>
    %245 = arith.addf %232, %244 : vector<8x128xf32>
    %246 = arith.mulf %243, %243 : vector<8x128xf32>
    %247 = arith.addf %233, %246 : vector<8x128xf32>
    %c1_74 = arith.constant 1 : index
    %c4_75 = arith.constant 4 : index
    %248 = arith.index_cast %1 : i32 to index
    %249 = vector.load %arg1[%c1_74, %c4_75, %248] : memref<3x8x128xf32, #tpu.memory_space<vmem>>, vector<1x1x128xf32>
    %250 = vector.shape_cast %249 : vector<1x1x128xf32> to vector<1x128xf32>
    %c1_76 = arith.constant 1 : index
    %c4_77 = arith.constant 4 : index
    %251 = arith.index_cast %1 : i32 to index
    %252 = vector.load %arg2[%c1_76, %c4_77, %251] : memref<3x8x128xf32, #tpu.memory_space<vmem>>, vector<1x1x128xf32>
    %253 = vector.shape_cast %252 : vector<1x1x128xf32> to vector<1x128xf32>
    %254 = vector.broadcast %250 : vector<1x128xf32> to vector<8x128xf32>
    %255 = arith.subf %254, %7 : vector<8x128xf32>
    %256 = vector.broadcast %253 : vector<1x128xf32> to vector<8x128xf32>
    %257 = arith.subf %256, %16 : vector<8x128xf32>
    %258 = arith.mulf %255, %255 : vector<8x128xf32>
    %259 = arith.addf %245, %258 : vector<8x128xf32>
    %260 = arith.mulf %257, %257 : vector<8x128xf32>
    %261 = arith.addf %247, %260 : vector<8x128xf32>
    %c2_78 = arith.constant 2 : index
    %c4_79 = arith.constant 4 : index
    %262 = arith.index_cast %1 : i32 to index
    %263 = vector.load %arg1[%c2_78, %c4_79, %262] : memref<3x8x128xf32, #tpu.memory_space<vmem>>, vector<1x1x128xf32>
    %264 = vector.shape_cast %263 : vector<1x1x128xf32> to vector<1x128xf32>
    %c2_80 = arith.constant 2 : index
    %c4_81 = arith.constant 4 : index
    %265 = arith.index_cast %1 : i32 to index
    %266 = vector.load %arg2[%c2_80, %c4_81, %265] : memref<3x8x128xf32, #tpu.memory_space<vmem>>, vector<1x1x128xf32>
    %267 = vector.shape_cast %266 : vector<1x1x128xf32> to vector<1x128xf32>
    %268 = vector.broadcast %264 : vector<1x128xf32> to vector<8x128xf32>
    %269 = arith.subf %268, %10 : vector<8x128xf32>
    %270 = vector.broadcast %267 : vector<1x128xf32> to vector<8x128xf32>
    %271 = arith.subf %270, %19 : vector<8x128xf32>
    %272 = arith.mulf %269, %269 : vector<8x128xf32>
    %273 = arith.addf %259, %272 : vector<8x128xf32>
    %274 = arith.mulf %271, %271 : vector<8x128xf32>
    %275 = arith.addf %261, %274 : vector<8x128xf32>
    %276 = math.sqrt %273 : vector<8x128xf32>
    %277 = math.sqrt %275 : vector<8x128xf32>
    %278 = arith.subf %276, %277 : vector<8x128xf32>
    %279 = math.absf %278 : vector<8x128xf32>
    %280 = vector.shape_cast %279 : vector<8x128xf32> to vector<1x8x128xf32>
    %cst_82 = arith.constant dense<0.000000e+00> : vector<1xf32>
    %281 = vector.multi_reduction <add>, %280, %cst_82 [1, 2] : vector<1x8x128xf32> to vector<1xf32>
    %282 = vector.shape_cast %281 : vector<1xf32> to vector<1x1x1xf32>
    %283 = vector.extract %282[0, 0, 0] : f32 from vector<1x1x1xf32>
    %284 = arith.addf %231, %283 : f32
    %cst_83 = arith.constant 0.000000e+00 : f32
    %285 = vector.broadcast %cst_83 : f32 to vector<8x128xf32>
    %cst_84 = arith.constant 0.000000e+00 : f32
    %286 = vector.broadcast %cst_84 : f32 to vector<8x128xf32>
    %c0_85 = arith.constant 0 : index
    %c5 = arith.constant 5 : index
    %287 = arith.index_cast %1 : i32 to index
    %288 = vector.load %arg1[%c0_85, %c5, %287] : memref<3x8x128xf32, #tpu.memory_space<vmem>>, vector<1x1x128xf32>
    %289 = vector.shape_cast %288 : vector<1x1x128xf32> to vector<1x128xf32>
    %c0_86 = arith.constant 0 : index
    %c5_87 = arith.constant 5 : index
    %290 = arith.index_cast %1 : i32 to index
    %291 = vector.load %arg2[%c0_86, %c5_87, %290] : memref<3x8x128xf32, #tpu.memory_space<vmem>>, vector<1x1x128xf32>
    %292 = vector.shape_cast %291 : vector<1x1x128xf32> to vector<1x128xf32>
    %293 = vector.broadcast %289 : vector<1x128xf32> to vector<8x128xf32>
    %294 = arith.subf %293, %4 : vector<8x128xf32>
    %295 = vector.broadcast %292 : vector<1x128xf32> to vector<8x128xf32>
    %296 = arith.subf %295, %13 : vector<8x128xf32>
    %297 = arith.mulf %294, %294 : vector<8x128xf32>
    %298 = arith.addf %285, %297 : vector<8x128xf32>
    %299 = arith.mulf %296, %296 : vector<8x128xf32>
    %300 = arith.addf %286, %299 : vector<8x128xf32>
    %c1_88 = arith.constant 1 : index
    %c5_89 = arith.constant 5 : index
    %301 = arith.index_cast %1 : i32 to index
    %302 = vector.load %arg1[%c1_88, %c5_89, %301] : memref<3x8x128xf32, #tpu.memory_space<vmem>>, vector<1x1x128xf32>
    %303 = vector.shape_cast %302 : vector<1x1x128xf32> to vector<1x128xf32>
    %c1_90 = arith.constant 1 : index
    %c5_91 = arith.constant 5 : index
    %304 = arith.index_cast %1 : i32 to index
    %305 = vector.load %arg2[%c1_90, %c5_91, %304] : memref<3x8x128xf32, #tpu.memory_space<vmem>>, vector<1x1x128xf32>
    %306 = vector.shape_cast %305 : vector<1x1x128xf32> to vector<1x128xf32>
    %307 = vector.broadcast %303 : vector<1x128xf32> to vector<8x128xf32>
    %308 = arith.subf %307, %7 : vector<8x128xf32>
    %309 = vector.broadcast %306 : vector<1x128xf32> to vector<8x128xf32>
    %310 = arith.subf %309, %16 : vector<8x128xf32>
    %311 = arith.mulf %308, %308 : vector<8x128xf32>
    %312 = arith.addf %298, %311 : vector<8x128xf32>
    %313 = arith.mulf %310, %310 : vector<8x128xf32>
    %314 = arith.addf %300, %313 : vector<8x128xf32>
    %c2_92 = arith.constant 2 : index
    %c5_93 = arith.constant 5 : index
    %315 = arith.index_cast %1 : i32 to index
    %316 = vector.load %arg1[%c2_92, %c5_93, %315] : memref<3x8x128xf32, #tpu.memory_space<vmem>>, vector<1x1x128xf32>
    %317 = vector.shape_cast %316 : vector<1x1x128xf32> to vector<1x128xf32>
    %c2_94 = arith.constant 2 : index
    %c5_95 = arith.constant 5 : index
    %318 = arith.index_cast %1 : i32 to index
    %319 = vector.load %arg2[%c2_94, %c5_95, %318] : memref<3x8x128xf32, #tpu.memory_space<vmem>>, vector<1x1x128xf32>
    %320 = vector.shape_cast %319 : vector<1x1x128xf32> to vector<1x128xf32>
    %321 = vector.broadcast %317 : vector<1x128xf32> to vector<8x128xf32>
    %322 = arith.subf %321, %10 : vector<8x128xf32>
    %323 = vector.broadcast %320 : vector<1x128xf32> to vector<8x128xf32>
    %324 = arith.subf %323, %19 : vector<8x128xf32>
    %325 = arith.mulf %322, %322 : vector<8x128xf32>
    %326 = arith.addf %312, %325 : vector<8x128xf32>
    %327 = arith.mulf %324, %324 : vector<8x128xf32>
    %328 = arith.addf %314, %327 : vector<8x128xf32>
    %329 = math.sqrt %326 : vector<8x128xf32>
    %330 = math.sqrt %328 : vector<8x128xf32>
    %331 = arith.subf %329, %330 : vector<8x128xf32>
    %332 = math.absf %331 : vector<8x128xf32>
    %333 = vector.shape_cast %332 : vector<8x128xf32> to vector<1x8x128xf32>
    %cst_96 = arith.constant dense<0.000000e+00> : vector<1xf32>
    %334 = vector.multi_reduction <add>, %333, %cst_96 [1, 2] : vector<1x8x128xf32> to vector<1xf32>
    %335 = vector.shape_cast %334 : vector<1xf32> to vector<1x1x1xf32>
    %336 = vector.extract %335[0, 0, 0] : f32 from vector<1x1x1xf32>
    %337 = arith.addf %284, %336 : f32
    %cst_97 = arith.constant 0.000000e+00 : f32
    %338 = vector.broadcast %cst_97 : f32 to vector<8x128xf32>
    %cst_98 = arith.constant 0.000000e+00 : f32
    %339 = vector.broadcast %cst_98 : f32 to vector<8x128xf32>
    %c0_99 = arith.constant 0 : index
    %c6 = arith.constant 6 : index
    %340 = arith.index_cast %1 : i32 to index
    %341 = vector.load %arg1[%c0_99, %c6, %340] : memref<3x8x128xf32, #tpu.memory_space<vmem>>, vector<1x1x128xf32>
    %342 = vector.shape_cast %341 : vector<1x1x128xf32> to vector<1x128xf32>
    %c0_100 = arith.constant 0 : index
    %c6_101 = arith.constant 6 : index
    %343 = arith.index_cast %1 : i32 to index
    %344 = vector.load %arg2[%c0_100, %c6_101, %343] : memref<3x8x128xf32, #tpu.memory_space<vmem>>, vector<1x1x128xf32>
    %345 = vector.shape_cast %344 : vector<1x1x128xf32> to vector<1x128xf32>
    %346 = vector.broadcast %342 : vector<1x128xf32> to vector<8x128xf32>
    %347 = arith.subf %346, %4 : vector<8x128xf32>
    %348 = vector.broadcast %345 : vector<1x128xf32> to vector<8x128xf32>
    %349 = arith.subf %348, %13 : vector<8x128xf32>
    %350 = arith.mulf %347, %347 : vector<8x128xf32>
    %351 = arith.addf %338, %350 : vector<8x128xf32>
    %352 = arith.mulf %349, %349 : vector<8x128xf32>
    %353 = arith.addf %339, %352 : vector<8x128xf32>
    %c1_102 = arith.constant 1 : index
    %c6_103 = arith.constant 6 : index
    %354 = arith.index_cast %1 : i32 to index
    %355 = vector.load %arg1[%c1_102, %c6_103, %354] : memref<3x8x128xf32, #tpu.memory_space<vmem>>, vector<1x1x128xf32>
    %356 = vector.shape_cast %355 : vector<1x1x128xf32> to vector<1x128xf32>
    %c1_104 = arith.constant 1 : index
    %c6_105 = arith.constant 6 : index
    %357 = arith.index_cast %1 : i32 to index
    %358 = vector.load %arg2[%c1_104, %c6_105, %357] : memref<3x8x128xf32, #tpu.memory_space<vmem>>, vector<1x1x128xf32>
    %359 = vector.shape_cast %358 : vector<1x1x128xf32> to vector<1x128xf32>
    %360 = vector.broadcast %356 : vector<1x128xf32> to vector<8x128xf32>
    %361 = arith.subf %360, %7 : vector<8x128xf32>
    %362 = vector.broadcast %359 : vector<1x128xf32> to vector<8x128xf32>
    %363 = arith.subf %362, %16 : vector<8x128xf32>
    %364 = arith.mulf %361, %361 : vector<8x128xf32>
    %365 = arith.addf %351, %364 : vector<8x128xf32>
    %366 = arith.mulf %363, %363 : vector<8x128xf32>
    %367 = arith.addf %353, %366 : vector<8x128xf32>
    %c2_106 = arith.constant 2 : index
    %c6_107 = arith.constant 6 : index
    %368 = arith.index_cast %1 : i32 to index
    %369 = vector.load %arg1[%c2_106, %c6_107, %368] : memref<3x8x128xf32, #tpu.memory_space<vmem>>, vector<1x1x128xf32>
    %370 = vector.shape_cast %369 : vector<1x1x128xf32> to vector<1x128xf32>
    %c2_108 = arith.constant 2 : index
    %c6_109 = arith.constant 6 : index
    %371 = arith.index_cast %1 : i32 to index
    %372 = vector.load %arg2[%c2_108, %c6_109, %371] : memref<3x8x128xf32, #tpu.memory_space<vmem>>, vector<1x1x128xf32>
    %373 = vector.shape_cast %372 : vector<1x1x128xf32> to vector<1x128xf32>
    %374 = vector.broadcast %370 : vector<1x128xf32> to vector<8x128xf32>
    %375 = arith.subf %374, %10 : vector<8x128xf32>
    %376 = vector.broadcast %373 : vector<1x128xf32> to vector<8x128xf32>
    %377 = arith.subf %376, %19 : vector<8x128xf32>
    %378 = arith.mulf %375, %375 : vector<8x128xf32>
    %379 = arith.addf %365, %378 : vector<8x128xf32>
    %380 = arith.mulf %377, %377 : vector<8x128xf32>
    %381 = arith.addf %367, %380 : vector<8x128xf32>
    %382 = math.sqrt %379 : vector<8x128xf32>
    %383 = math.sqrt %381 : vector<8x128xf32>
    %384 = arith.subf %382, %383 : vector<8x128xf32>
    %385 = math.absf %384 : vector<8x128xf32>
    %386 = vector.shape_cast %385 : vector<8x128xf32> to vector<1x8x128xf32>
    %cst_110 = arith.constant dense<0.000000e+00> : vector<1xf32>
    %387 = vector.multi_reduction <add>, %386, %cst_110 [1, 2] : vector<1x8x128xf32> to vector<1xf32>
    %388 = vector.shape_cast %387 : vector<1xf32> to vector<1x1x1xf32>
    %389 = vector.extract %388[0, 0, 0] : f32 from vector<1x1x1xf32>
    %390 = arith.addf %337, %389 : f32
    %cst_111 = arith.constant 0.000000e+00 : f32
    %391 = vector.broadcast %cst_111 : f32 to vector<8x128xf32>
    %cst_112 = arith.constant 0.000000e+00 : f32
    %392 = vector.broadcast %cst_112 : f32 to vector<8x128xf32>
    %c0_113 = arith.constant 0 : index
    %c7 = arith.constant 7 : index
    %393 = arith.index_cast %1 : i32 to index
    %394 = vector.load %arg1[%c0_113, %c7, %393] : memref<3x8x128xf32, #tpu.memory_space<vmem>>, vector<1x1x128xf32>
    %395 = vector.shape_cast %394 : vector<1x1x128xf32> to vector<1x128xf32>
    %c0_114 = arith.constant 0 : index
    %c7_115 = arith.constant 7 : index
    %396 = arith.index_cast %1 : i32 to index
    %397 = vector.load %arg2[%c0_114, %c7_115, %396] : memref<3x8x128xf32, #tpu.memory_space<vmem>>, vector<1x1x128xf32>
    %398 = vector.shape_cast %397 : vector<1x1x128xf32> to vector<1x128xf32>
    %399 = vector.broadcast %395 : vector<1x128xf32> to vector<8x128xf32>
    %400 = arith.subf %399, %4 : vector<8x128xf32>
    %401 = vector.broadcast %398 : vector<1x128xf32> to vector<8x128xf32>
    %402 = arith.subf %401, %13 : vector<8x128xf32>
    %403 = arith.mulf %400, %400 : vector<8x128xf32>
    %404 = arith.addf %391, %403 : vector<8x128xf32>
    %405 = arith.mulf %402, %402 : vector<8x128xf32>
    %406 = arith.addf %392, %405 : vector<8x128xf32>
    %c1_116 = arith.constant 1 : index
    %c7_117 = arith.constant 7 : index
    %407 = arith.index_cast %1 : i32 to index
    %408 = vector.load %arg1[%c1_116, %c7_117, %407] : memref<3x8x128xf32, #tpu.memory_space<vmem>>, vector<1x1x128xf32>
    %409 = vector.shape_cast %408 : vector<1x1x128xf32> to vector<1x128xf32>
    %c1_118 = arith.constant 1 : index
    %c7_119 = arith.constant 7 : index
    %410 = arith.index_cast %1 : i32 to index
    %411 = vector.load %arg2[%c1_118, %c7_119, %410] : memref<3x8x128xf32, #tpu.memory_space<vmem>>, vector<1x1x128xf32>
    %412 = vector.shape_cast %411 : vector<1x1x128xf32> to vector<1x128xf32>
    %413 = vector.broadcast %409 : vector<1x128xf32> to vector<8x128xf32>
    %414 = arith.subf %413, %7 : vector<8x128xf32>
    %415 = vector.broadcast %412 : vector<1x128xf32> to vector<8x128xf32>
    %416 = arith.subf %415, %16 : vector<8x128xf32>
    %417 = arith.mulf %414, %414 : vector<8x128xf32>
    %418 = arith.addf %404, %417 : vector<8x128xf32>
    %419 = arith.mulf %416, %416 : vector<8x128xf32>
    %420 = arith.addf %406, %419 : vector<8x128xf32>
    %c2_120 = arith.constant 2 : index
    %c7_121 = arith.constant 7 : index
    %421 = arith.index_cast %1 : i32 to index
    %422 = vector.load %arg1[%c2_120, %c7_121, %421] : memref<3x8x128xf32, #tpu.memory_space<vmem>>, vector<1x1x128xf32>
    %423 = vector.shape_cast %422 : vector<1x1x128xf32> to vector<1x128xf32>
    %c2_122 = arith.constant 2 : index
    %c7_123 = arith.constant 7 : index
    %424 = arith.index_cast %1 : i32 to index
    %425 = vector.load %arg2[%c2_122, %c7_123, %424] : memref<3x8x128xf32, #tpu.memory_space<vmem>>, vector<1x1x128xf32>
    %426 = vector.shape_cast %425 : vector<1x1x128xf32> to vector<1x128xf32>
    %427 = vector.broadcast %423 : vector<1x128xf32> to vector<8x128xf32>
    %428 = arith.subf %427, %10 : vector<8x128xf32>
    %429 = vector.broadcast %426 : vector<1x128xf32> to vector<8x128xf32>
    %430 = arith.subf %429, %19 : vector<8x128xf32>
    %431 = arith.mulf %428, %428 : vector<8x128xf32>
    %432 = arith.addf %418, %431 : vector<8x128xf32>
    %433 = arith.mulf %430, %430 : vector<8x128xf32>
    %434 = arith.addf %420, %433 : vector<8x128xf32>
    %435 = math.sqrt %432 : vector<8x128xf32>
    %436 = math.sqrt %434 : vector<8x128xf32>
    %437 = arith.subf %435, %436 : vector<8x128xf32>
    %438 = math.absf %437 : vector<8x128xf32>
    %439 = vector.shape_cast %438 : vector<8x128xf32> to vector<1x8x128xf32>
    %cst_124 = arith.constant dense<0.000000e+00> : vector<1xf32>
    %440 = vector.multi_reduction <add>, %439, %cst_124 [1, 2] : vector<1x8x128xf32> to vector<1xf32>
    %441 = vector.shape_cast %440 : vector<1xf32> to vector<1x1x1xf32>
    %442 = vector.extract %441[0, 0, 0] : f32 from vector<1x1x1xf32>
    %443 = arith.addf %390, %442 : f32
    %cst_125 = arith.constant 5.000000e-01 : f32
    %444 = arith.mulf %cst_125, %443 : f32
    %445 = arith.addf %cst, %444 : f32
    %c1_i32 = arith.constant 1 : i32
    %446 = vector.broadcast %445 : f32 to vector<1x8x128xf32>
    %c0_126 = arith.constant 0 : index
    %c0_127 = arith.constant 0 : index
    %c0_128 = arith.constant 0 : index
    %447 = vector.load %arg3[%c0_126, %c0_127, %c0_128] : memref<1x8x128xf32, #tpu.memory_space<vmem>>, vector<1x8x128xf32>
    tpu.vector_store %arg3[%c0_126, %c0_127, %c0_128], %446 {strides = array<i32>} : memref<1x8x128xf32, #tpu.memory_space<vmem>>, vector<1x8x128xf32>,
    return
  }
  func.func @transform_0(%arg0: i32) -> (i32, i32, i32) {
    %c0_i32 = arith.constant 0 : i32
    %c0_i32_0 = arith.constant 0 : i32
    %c0_i32_1 = arith.constant 0 : i32
    return %c0_i32, %c0_i32_0, %arg0 : i32, i32, i32
  }
  func.func @transform_1(%arg0: i32) -> (i32, i32, i32) {
    %c0_i32 = arith.constant 0 : i32
    %c0_i32_0 = arith.constant 0 : i32
    %c0_i32_1 = arith.constant 0 : i32
    return %c0_i32, %c0_i32_0, %arg0 : i32, i32, i32
  }
  func.func @transform_2(%arg0: i32) -> (i32, i32, i32) {
    %c0_i32 = arith.constant 0 : i32
    %c0_i32_0 = arith.constant 0 : i32
    %c0_i32_1 = arith.constant 0 : i32
    return %arg0, %c0_i32, %c0_i32_0 : i32, i32, i32
  }
}

</mosaic_0001>

<llo_original>
// kernel: joint_bone_loss.1
$region0: #{joint_bone_loss.1}
  #allocation0 [shape = 'u32[]', space=smem, size = 0x4, offset = 0x4, fixed_abs, tag = 'smem constant byte address 0x4 - core index']
  #allocation1 [shape = 'u32[72,128]{1,0:T(1,128)}', space=vmem, size = 0x9000, scoped, tag = 'internal scratch']
  %s0 = inlined_call_operand.vmem [shape: f32[3,8,128], index: 0, kind: input, shape index: {}]
  %s1 = inlined_call_operand.vmem [shape: f32[3,8,128], index: 1, kind: input, shape index: {}]
  %s2 = inlined_call_operand.vmem [shape: f32[1,8,128], index: 2, kind: output, shape index: {}]
  %s3 = sld [smem:[#allocation0]]
  $region18: #{joint_bone_loss.1} parent=0
    _
  %s5 = ssub.s32 1, %s3
  %s6 = scalar_select 0, %s5, %s3
  // Predicated region
  $region2: #{joint_bone_loss.1} parent=0 // pred_check
    _
  $region3: #{joint_bone_loss.1} parent=0 // pred_check_branch
    %8 = sbr.rel (0) target = $region5
  $region4: #{joint_bone_loss.1} parent=0 // pred_region
    _
  $region5: #{joint_bone_loss.1} parent=0 // pred_fallthru
    _
  // Predicated region
  $region6: #{joint_bone_loss.1} parent=0 // pred_check
    _
  $region7: #{joint_bone_loss.1} parent=0 // pred_check_branch
    %10 = sbr.rel (0) target = $region9
  $region8: #{joint_bone_loss.1} parent=0 // pred_region
    _
  $region9: #{joint_bone_loss.1} parent=0 // pred_fallthru
    _
  %v11 = vld [vmem:[%s0] sm:$0xff]
  %s12 = sadd.s32 0, 8
  %s13 = scalar_lea.vmem %s0, %s12
  %v14 = vld [vmem:[%s13] sm:$0xff]
  %s15 = sadd.s32 0, 16
  %s16 = scalar_lea.vmem %s0, %s15
  %v17 = vld [vmem:[%s16] sm:$0xff]
  %v18 = vld [vmem:[%s1] sm:$0xff]
  %s19 = scalar_lea.vmem %s1, %s12
  %v20 = vld [vmem:[%s19] sm:$0xff]
  %s21 = scalar_lea.vmem %s1, %s15
  %v22 = vld [vmem:[%s21] sm:$0xff]
  %v23 = vld [vmem:[%s0] sm:$0x1]
  %v24 = vld [vmem:[%s1] sm:$0x1]
  %v25 = vperm.slane %v23, 0
  %v26 = vsub.f32 %v25, %v11
  %v27 = vperm.slane %v24, 0
  %v28 = vsub.f32 %v27, %v18
  %v29 = vmul.f32 %v26, %v26
  %v30 = vadd.f32 %v29, 0.0
  %v31 = vmul.f32 %v28, %v28
  %v32 = vadd.f32 %v31, 0.0
  %v33 = vld [vmem:[%s13] sm:$0x1]
  %v34 = vld [vmem:[%s19] sm:$0x1]
  %v35 = vperm.slane %v33, 0
  %v36 = vsub.f32 %v35, %v14
  %v37 = vperm.slane %v34, 0
  %v38 = vsub.f32 %v37, %v20
  %v39 = vmul.f32 %v36, %v36
  %v40 = vadd.f32 %v30, %v39
  %v41 = vmul.f32 %v38, %v38
  %v42 = vadd.f32 %v32, %v41
  %v43 = vld [vmem:[%s16] sm:$0x1]
  %v44 = vld [vmem:[%s21] sm:$0x1]
  %v45 = vperm.slane %v43, 0
  %v46 = vsub.f32 %v45, %v17
  %v47 = vperm.slane %v44, 0
  %v48 = vsub.f32 %v47, %v22
  %v49 = vmul.f32 %v46, %v46
  %v50 = vadd.f32 %v40, %v49
  %v51 = vmul.f32 %v48, %v48
  %v52 = vadd.f32 %v42, %v51
  %v53 = vrsqrt.pop %v50
  %v54 = vmul.f32 %v53, %v50
  %v55 = vmul.f32 %v54, %v53
  %v56 = vmul.f32 0.5, %v55
  %v57 = vsub.f32 1.5, %v56
  %v58 = vmul.f32 %v53, %v57
  %v59 = vmul.f32 %v50, %v58
  %vm60 = vcmp.eq.f32.partialorder %v50, inf
  %v61 = vsel %vm60, %v50, %v59
  %vm62 = vcmp.eq.f32.partialorder %v50, 0.0
  %v63 = vand.u32 %v50, 2147483648
  %v64 = vsel %vm62, %v63, %v61
  %v65 = vrsqrt.pop %v52
  %v66 = vmul.f32 %v65, %v52
  %v67 = vmul.f32 %v66, %v65
  %v68 = vmul.f32 0.5, %v67
  %v69 = vsub.f32 1.5, %v68
  %v70 = vmul.f32 %v65, %v69
  %v71 = vmul.f32 %v52, %v70
  %vm72 = vcmp.eq.f32.partialorder %v52, inf
  %v73 = vsel %vm72, %v52, %v71
  %vm74 = vcmp.eq.f32.partialorder %v52, 0.0
  %v75 = vand.u32 %v52, 2147483648
  %v76 = vsel %vm74, %v75, %v73
  %v77 = vsub.f32 %v64, %v76
  %v78 = vand.u32 2147483647, %v77
  %79 = vadd.xlane.f32.xlu0 %v78
  %v80 = vpop.xlane.xlu0 %79
  %v81 = vrot.slane %v80, 4
  %v82 = vadd.f32 %v80, %v81
  %v83 = vrot.slane %v82, 2
  %v84 = vadd.f32 %v82, %v83
  %v85 = vrot.slane %v84, 1
  %v86 = vadd.f32 %v84, %v85
  %s87 = vtos %v86
  %s88 = sadd.f32 %s87, 0.0
  %v89 = vld [vmem:[%s0 + $0x1] sm:$0x1]
  %v90 = vld [vmem:[%s1 + $0x1] sm:$0x1]
  %v91 = vperm.slane %v89, 0
  %v92 = vsub.f32 %v91, %v11
  %v93 = vperm.slane %v90, 0
  %v94 = vsub.f32 %v93, %v18
  %v95 = vmul.f32 %v92, %v92
  %v96 = vadd.f32 %v95, 0.0
  %v97 = vmul.f32 %v94, %v94
  %v98 = vadd.f32 %v97, 0.0
  %v99 = vld [vmem:[%s13 + $0x1] sm:$0x1]
  %v100 = vld [vmem:[%s19 + $0x1] sm:$0x1]
  %v101 = vperm.slane %v99, 0
  %v102 = vsub.f32 %v101, %v14
  %v103 = vperm.slane %v100, 0
  %v104 = vsub.f32 %v103, %v20
  %v105 = vmul.f32 %v102, %v102
  %v106 = vadd.f32 %v96, %v105
  %v107 = vmul.f32 %v104, %v104
  %v108 = vadd.f32 %v98, %v107
  %v109 = vld [vmem:[%s16 + $0x1] sm:$0x1]
  %v110 = vld [vmem:[%s21 + $0x1] sm:$0x1]
  %v111 = vperm.slane %v109, 0
  %v112 = vsub.f32 %v111, %v17
  %v113 = vperm.slane %v110, 0
  %v114 = vsub.f32 %v113, %v22
  %v115 = vmul.f32 %v112, %v112
  %v116 = vadd.f32 %v106, %v115
  %v117 = vmul.f32 %v114, %v114
  %v118 = vadd.f32 %v108, %v117
  %v119 = vrsqrt.pop %v116
  %v120 = vmul.f32 %v119, %v116
  %v121 = vmul.f32 %v120, %v119
  %v122 = vmul.f32 0.5, %v121
  %v123 = vsub.f32 1.5, %v122
  %v124 = vmul.f32 %v119, %v123
  %v125 = vmul.f32 %v116, %v124
  %vm126 = vcmp.eq.f32.partialorder %v116, inf
  %v127 = vsel %vm126, %v116, %v125
  %vm128 = vcmp.eq.f32.partialorder %v116, 0.0
  %v129 = vand.u32 %v116, 2147483648
  %v130 = vsel %vm128, %v129, %v127
  %v131 = vrsqrt.pop %v118
  %v132 = vmul.f32 %v131, %v118
  %v133 = vmul.f32 %v132, %v131
  %v134 = vmul.f32 0.5, %v133
  %v135 = vsub.f32 1.5, %v134
  %v136 = vmul.f32 %v131, %v135
  %v137 = vmul.f32 %v118, %v136
  %vm138 = vcmp.eq.f32.partialorder %v118, inf
  %v139 = vsel %vm138, %v118, %v137
  %vm140 = vcmp.eq.f32.partialorder %v118, 0.0
  %v141 = vand.u32 %v118, 2147483648
  %v142 = vsel %vm140, %v141, %v139
  %v143 = vsub.f32 %v130, %v142
  %v144 = vand.u32 2147483647, %v143
  %145 = vadd.xlane.f32.xlu0 %v144
  %v146 = vpop.xlane.xlu0 %145
  %v147 = vrot.slane %v146, 4
  %v148 = vadd.f32 %v146, %v147
  %v149 = vrot.slane %v148, 2
  %v150 = vadd.f32 %v148, %v149
  %v151 = vrot.slane %v150, 1
  %v152 = vadd.f32 %v150, %v151
  %s153 = vtos %v152
  %s154 = sadd.f32 %s88, %s153
  %v155 = vld [vmem:[%s0 + $0x2] sm:$0x1]
  %v156 = vld [vmem:[%s1 + $0x2] sm:$0x1]
  %v157 = vperm.slane %v155, 0
  %v158 = vsub.f32 %v157, %v11
  %v159 = vperm.slane %v156, 0
  %v160 = vsub.f32 %v159, %v18
  %v161 = vmul.f32 %v158, %v158
  %v162 = vadd.f32 %v161, 0.0
  %v163 = vmul.f32 %v160, %v160
  %v164 = vadd.f32 %v163, 0.0
  %v165 = vld [vmem:[%s13 + $0x2] sm:$0x1]
  %v166 = vld [vmem:[%s19 + $0x2] sm:$0x1]
  %v167 = vperm.slane %v165, 0
  %v168 = vsub.f32 %v167, %v14
  %v169 = vperm.slane %v166, 0
  %v170 = vsub.f32 %v169, %v20
  %v171 = vmul.f32 %v168, %v168
  %v172 = vadd.f32 %v162, %v171
  %v173 = vmul.f32 %v170, %v170
  %v174 = vadd.f32 %v164, %v173
  %v175 = vld [vmem:[%s16 + $0x2] sm:$0x1]
  %v176 = vld [vmem:[%s21 + $0x2] sm:$0x1]
  %v177 = vperm.slane %v175, 0
  %v178 = vsub.f32 %v177, %v17
  %v179 = vperm.slane %v176, 0
  %v180 = vsub.f32 %v179, %v22
  %v181 = vmul.f32 %v178, %v178
  %v182 = vadd.f32 %v172, %v181
  %v183 = vmul.f32 %v180, %v180
  %v184 = vadd.f32 %v174, %v183
  %v185 = vrsqrt.pop %v182
  %v186 = vmul.f32 %v185, %v182
  %v187 = vmul.f32 %v186, %v185
  %v188 = vmul.f32 0.5, %v187
  %v189 = vsub.f32 1.5, %v188
  %v190 = vmul.f32 %v185, %v189
  %v191 = vmul.f32 %v182, %v190
  %vm192 = vcmp.eq.f32.partialorder %v182, inf
  %v193 = vsel %vm192, %v182, %v191
  %vm194 = vcmp.eq.f32.partialorder %v182, 0.0
  %v195 = vand.u32 %v182, 2147483648
  %v196 = vsel %vm194, %v195, %v193
  %v197 = vrsqrt.pop %v184
  %v198 = vmul.f32 %v197, %v184
  %v199 = vmul.f32 %v198, %v197
  %v200 = vmul.f32 0.5, %v199
  %v201 = vsub.f32 1.5, %v200
  %v202 = vmul.f32 %v197, %v201
  %v203 = vmul.f32 %v184, %v202
  %vm204 = vcmp.eq.f32.partialorder %v184, inf
  %v205 = vsel %vm204, %v184, %v203
  %vm206 = vcmp.eq.f32.partialorder %v184, 0.0
  %v207 = vand.u32 %v184, 2147483648
  %v208 = vsel %vm206, %v207, %v205
  %v209 = vsub.f32 %v196, %v208
  %v210 = vand.u32 2147483647, %v209
  %211 = vadd.xlane.f32.xlu0 %v210
  %v212 = vpop.xlane.xlu0 %211
  %v213 = vrot.slane %v212, 4
  %v214 = vadd.f32 %v212, %v213
  %v215 = vrot.slane %v214, 2
  %v216 = vadd.f32 %v214, %v215
  %v217 = vrot.slane %v216, 1
  %v218 = vadd.f32 %v216, %v217
  %s219 = vtos %v218
  %s220 = sadd.f32 %s154, %s219
  %v221 = vld [vmem:[%s0 + $0x3] sm:$0x1]
  %v222 = vld [vmem:[%s1 + $0x3] sm:$0x1]
  %v223 = vperm.slane %v221, 0
  %v224 = vsub.f32 %v223, %v11
  %v225 = vperm.slane %v222, 0
  %v226 = vsub.f32 %v225, %v18
  %v227 = vmul.f32 %v224, %v224
  %v228 = vadd.f32 %v227, 0.0
  %v229 = vmul.f32 %v226, %v226
  %v230 = vadd.f32 %v229, 0.0
  %v231 = vld [vmem:[%s13 + $0x3] sm:$0x1]
  %v232 = vld [vmem:[%s19 + $0x3] sm:$0x1]
  %v233 = vperm.slane %v231, 0
  %v234 = vsub.f32 %v233, %v14
  %v235 = vperm.slane %v232, 0
  %v236 = vsub.f32 %v235, %v20
  %v237 = vmul.f32 %v234, %v234
  %v238 = vadd.f32 %v228, %v237
  %v239 = vmul.f32 %v236, %v236
  %v240 = vadd.f32 %v230, %v239
  %v241 = vld [vmem:[%s16 + $0x3] sm:$0x1]
  %v242 = vld [vmem:[%s21 + $0x3] sm:$0x1]
  %v243 = vperm.slane %v241, 0
  %v244 = vsub.f32 %v243, %v17
  %v245 = vperm.slane %v242, 0
  %v246 = vsub.f32 %v245, %v22
  %v247 = vmul.f32 %v244, %v244
  %v248 = vadd.f32 %v238, %v247
  %v249 = vmul.f32 %v246, %v246
  %v250 = vadd.f32 %v240, %v249
  %v251 = vrsqrt.pop %v248
  %v252 = vmul.f32 %v251, %v248
  %v253 = vmul.f32 %v252, %v251
  %v254 = vmul.f32 0.5, %v253
  %v255 = vsub.f32 1.5, %v254
  %v256 = vmul.f32 %v251, %v255
  %v257 = vmul.f32 %v248, %v256
  %vm258 = vcmp.eq.f32.partialorder %v248, inf
  %v259 = vsel %vm258, %v248, %v257
  %vm260 = vcmp.eq.f32.partialorder %v248, 0.0
  %v261 = vand.u32 %v248, 2147483648
  %v262 = vsel %vm260, %v261, %v259
  %v263 = vrsqrt.pop %v250
  %v264 = vmul.f32 %v263, %v250
  %v265 = vmul.f32 %v264, %v263
  %v266 = vmul.f32 0.5, %v265
  %v267 = vsub.f32 1.5, %v266
  %v268 = vmul.f32 %v263, %v267
  %v269 = vmul.f32 %v250, %v268
  %vm270 = vcmp.eq.f32.partialorder %v250, inf
  %v271 = vsel %vm270, %v250, %v269
  %vm272 = vcmp.eq.f32.partialorder %v250, 0.0
  %v273 = vand.u32 %v250, 2147483648
  %v274 = vsel %vm272, %v273, %v271
  %v275 = vsub.f32 %v262, %v274
  %v276 = vand.u32 2147483647, %v275
  %277 = vadd.xlane.f32.xlu0 %v276
  %v278 = vpop.xlane.xlu0 %277
  %v279 = vrot.slane %v278, 4
  %v280 = vadd.f32 %v278, %v279
  %v281 = vrot.slane %v280, 2
  %v282 = vadd.f32 %v280, %v281
  %v283 = vrot.slane %v282, 1
  %v284 = vadd.f32 %v282, %v283
  %s285 = vtos %v284
  %s286 = sadd.f32 %s220, %s285
  %v287 = vld [vmem:[%s0 + $0x4] sm:$0x1]
  %v288 = vld [vmem:[%s1 + $0x4] sm:$0x1]
  %v289 = vperm.slane %v287, 0
  %v290 = vsub.f32 %v289, %v11
  %v291 = vperm.slane %v288, 0
  %v292 = vsub.f32 %v291, %v18
  %v293 = vmul.f32 %v290, %v290
  %v294 = vadd.f32 %v293, 0.0
  %v295 = vmul.f32 %v292, %v292
  %v296 = vadd.f32 %v295, 0.0
  %v297 = vld [vmem:[%s13 + $0x4] sm:$0x1]
  %v298 = vld [vmem:[%s19 + $0x4] sm:$0x1]
  %v299 = vperm.slane %v297, 0
  %v300 = vsub.f32 %v299, %v14
  %v301 = vperm.slane %v298, 0
  %v302 = vsub.f32 %v301, %v20
  %v303 = vmul.f32 %v300, %v300
  %v304 = vadd.f32 %v294, %v303
  %v305 = vmul.f32 %v302, %v302
  %v306 = vadd.f32 %v296, %v305
  %v307 = vld [vmem:[%s16 + $0x4] sm:$0x1]
  %v308 = vld [vmem:[%s21 + $0x4] sm:$0x1]
  %v309 = vperm.slane %v307, 0
  %v310 = vsub.f32 %v309, %v17
  %v311 = vperm.slane %v308, 0
  %v312 = vsub.f32 %v311, %v22
  %v313 = vmul.f32 %v310, %v310
  %v314 = vadd.f32 %v304, %v313
  %v315 = vmul.f32 %v312, %v312
  %v316 = vadd.f32 %v306, %v315
  %v317 = vrsqrt.pop %v314
  %v318 = vmul.f32 %v317, %v314
  %v319 = vmul.f32 %v318, %v317
  %v320 = vmul.f32 0.5, %v319
  %v321 = vsub.f32 1.5, %v320
  %v322 = vmul.f32 %v317, %v321
  %v323 = vmul.f32 %v314, %v322
  %vm324 = vcmp.eq.f32.partialorder %v314, inf
  %v325 = vsel %vm324, %v314, %v323
  %vm326 = vcmp.eq.f32.partialorder %v314, 0.0
  %v327 = vand.u32 %v314, 2147483648
  %v328 = vsel %vm326, %v327, %v325
  %v329 = vrsqrt.pop %v316
  %v330 = vmul.f32 %v329, %v316
  %v331 = vmul.f32 %v330, %v329
  %v332 = vmul.f32 0.5, %v331
  %v333 = vsub.f32 1.5, %v332
  %v334 = vmul.f32 %v329, %v333
  %v335 = vmul.f32 %v316, %v334
  %vm336 = vcmp.eq.f32.partialorder %v316, inf
  %v337 = vsel %vm336, %v316, %v335
  %vm338 = vcmp.eq.f32.partialorder %v316, 0.0
  %v339 = vand.u32 %v316, 2147483648
  %v340 = vsel %vm338, %v339, %v337
  %v341 = vsub.f32 %v328, %v340
  %v342 = vand.u32 2147483647, %v341
  %343 = vadd.xlane.f32.xlu0 %v342
  %v344 = vpop.xlane.xlu0 %343
  %v345 = vrot.slane %v344, 4
  %v346 = vadd.f32 %v344, %v345
  %v347 = vrot.slane %v346, 2
  %v348 = vadd.f32 %v346, %v347
  %v349 = vrot.slane %v348, 1
  %v350 = vadd.f32 %v348, %v349
  %s351 = vtos %v350
  %s352 = sadd.f32 %s286, %s351
  %v353 = vld [vmem:[%s0 + $0x5] sm:$0x1]
  %v354 = vld [vmem:[%s1 + $0x5] sm:$0x1]
  %v355 = vperm.slane %v353, 0
  %v356 = vsub.f32 %v355, %v11
  %v357 = vperm.slane %v354, 0
  %v358 = vsub.f32 %v357, %v18
  %v359 = vmul.f32 %v356, %v356
  %v360 = vadd.f32 %v359, 0.0
  %v361 = vmul.f32 %v358, %v358
  %v362 = vadd.f32 %v361, 0.0
  %v363 = vld [vmem:[%s13 + $0x5] sm:$0x1]
  %v364 = vld [vmem:[%s19 + $0x5] sm:$0x1]
  %v365 = vperm.slane %v363, 0
  %v366 = vsub.f32 %v365, %v14
  %v367 = vperm.slane %v364, 0
  %v368 = vsub.f32 %v367, %v20
  %v369 = vmul.f32 %v366, %v366
  %v370 = vadd.f32 %v360, %v369
  %v371 = vmul.f32 %v368, %v368
  %v372 = vadd.f32 %v362, %v371
  %v373 = vld [vmem:[%s16 + $0x5] sm:$0x1]
  %v374 = vld [vmem:[%s21 + $0x5] sm:$0x1]
  %v375 = vperm.slane %v373, 0
  %v376 = vsub.f32 %v375, %v17
  %v377 = vperm.slane %v374, 0
  %v378 = vsub.f32 %v377, %v22
  %v379 = vmul.f32 %v376, %v376
  %v380 = vadd.f32 %v370, %v379
  %v381 = vmul.f32 %v378, %v378
  %v382 = vadd.f32 %v372, %v381
  %v383 = vrsqrt.pop %v380
  %v384 = vmul.f32 %v383, %v380
  %v385 = vmul.f32 %v384, %v383
  %v386 = vmul.f32 0.5, %v385
  %v387 = vsub.f32 1.5, %v386
  %v388 = vmul.f32 %v383, %v387
  %v389 = vmul.f32 %v380, %v388
  %vm390 = vcmp.eq.f32.partialorder %v380, inf
  %v391 = vsel %vm390, %v380, %v389
  %vm392 = vcmp.eq.f32.partialorder %v380, 0.0
  %v393 = vand.u32 %v380, 2147483648
  %v394 = vsel %vm392, %v393, %v391
  %v395 = vrsqrt.pop %v382
  %v396 = vmul.f32 %v395, %v382
  %v397 = vmul.f32 %v396, %v395
  %v398 = vmul.f32 0.5, %v397
  %v399 = vsub.f32 1.5, %v398
  %v400 = vmul.f32 %v395, %v399
  %v401 = vmul.f32 %v382, %v400
  %vm402 = vcmp.eq.f32.partialorder %v382, inf
  %v403 = vsel %vm402, %v382, %v401
  %vm404 = vcmp.eq.f32.partialorder %v382, 0.0
  %v405 = vand.u32 %v382, 2147483648
  %v406 = vsel %vm404, %v405, %v403
  %v407 = vsub.f32 %v394, %v406
  %v408 = vand.u32 2147483647, %v407
  %409 = vadd.xlane.f32.xlu0 %v408
  %v410 = vpop.xlane.xlu0 %409
  %v411 = vrot.slane %v410, 4
  %v412 = vadd.f32 %v410, %v411
  %v413 = vrot.slane %v412, 2
  %v414 = vadd.f32 %v412, %v413
  %v415 = vrot.slane %v414, 1
  %v416 = vadd.f32 %v414, %v415
  %s417 = vtos %v416
  %s418 = sadd.f32 %s352, %s417
  %v419 = vld [vmem:[%s0 + $0x6] sm:$0x1]
  %v420 = vld [vmem:[%s1 + $0x6] sm:$0x1]
  %v421 = vperm.slane %v419, 0
  %v422 = vsub.f32 %v421, %v11
  %v423 = vperm.slane %v420, 0
  %v424 = vsub.f32 %v423, %v18
  %v425 = vmul.f32 %v422, %v422
  %v426 = vadd.f32 %v425, 0.0
  %v427 = vmul.f32 %v424, %v424
  %v428 = vadd.f32 %v427, 0.0
  %v429 = vld [vmem:[%s13 + $0x6] sm:$0x1]
  %v430 = vld [vmem:[%s19 + $0x6] sm:$0x1]
  %v431 = vperm.slane %v429, 0
  %v432 = vsub.f32 %v431, %v14
  %v433 = vperm.slane %v430, 0
  %v434 = vsub.f32 %v433, %v20
  %v435 = vmul.f32 %v432, %v432
  %v436 = vadd.f32 %v426, %v435
  %v437 = vmul.f32 %v434, %v434
  %v438 = vadd.f32 %v428, %v437
  %v439 = vld [vmem:[%s16 + $0x6] sm:$0x1]
  %v440 = vld [vmem:[%s21 + $0x6] sm:$0x1]
  %v441 = vperm.slane %v439, 0
  %v442 = vsub.f32 %v441, %v17
  %v443 = vperm.slane %v440, 0
  %v444 = vsub.f32 %v443, %v22
  %v445 = vmul.f32 %v442, %v442
  %v446 = vadd.f32 %v436, %v445
  %v447 = vmul.f32 %v444, %v444
  %v448 = vadd.f32 %v438, %v447
  %v449 = vrsqrt.pop %v446
  %v450 = vmul.f32 %v449, %v446
  %v451 = vmul.f32 %v450, %v449
  %v452 = vmul.f32 0.5, %v451
  %v453 = vsub.f32 1.5, %v452
  %v454 = vmul.f32 %v449, %v453
  %v455 = vmul.f32 %v446, %v454
  %vm456 = vcmp.eq.f32.partialorder %v446, inf
  %v457 = vsel %vm456, %v446, %v455
  %vm458 = vcmp.eq.f32.partialorder %v446, 0.0
  %v459 = vand.u32 %v446, 2147483648
  %v460 = vsel %vm458, %v459, %v457
  %v461 = vrsqrt.pop %v448
  %v462 = vmul.f32 %v461, %v448
  %v463 = vmul.f32 %v462, %v461
  %v464 = vmul.f32 0.5, %v463
  %v465 = vsub.f32 1.5, %v464
  %v466 = vmul.f32 %v461, %v465
  %v467 = vmul.f32 %v448, %v466
  %vm468 = vcmp.eq.f32.partialorder %v448, inf
  %v469 = vsel %vm468, %v448, %v467
  %vm470 = vcmp.eq.f32.partialorder %v448, 0.0
  %v471 = vand.u32 %v448, 2147483648
  %v472 = vsel %vm470, %v471, %v469
  %v473 = vsub.f32 %v460, %v472
  %v474 = vand.u32 2147483647, %v473
  %475 = vadd.xlane.f32.xlu0 %v474
  %v476 = vpop.xlane.xlu0 %475
  %v477 = vrot.slane %v476, 4
  %v478 = vadd.f32 %v476, %v477
  %v479 = vrot.slane %v478, 2
  %v480 = vadd.f32 %v478, %v479
  %v481 = vrot.slane %v480, 1
  %v482 = vadd.f32 %v480, %v481
  %s483 = vtos %v482
  %s484 = sadd.f32 %s418, %s483
  %v485 = vld [vmem:[%s0 + $0x7] sm:$0x1]
  %v486 = vld [vmem:[%s1 + $0x7] sm:$0x1]
  %v487 = vperm.slane %v485, 0
  %v488 = vsub.f32 %v487, %v11
  %v489 = vperm.slane %v486, 0
  %v490 = vsub.f32 %v489, %v18
  %v491 = vmul.f32 %v488, %v488
  %v492 = vadd.f32 %v491, 0.0
  %v493 = vmul.f32 %v490, %v490
  %v494 = vadd.f32 %v493, 0.0
  %v495 = vld [vmem:[%s13 + $0x7] sm:$0x1]
  %v496 = vld [vmem:[%s19 + $0x7] sm:$0x1]
  %v497 = vperm.slane %v495, 0
  %v498 = vsub.f32 %v497, %v14
  %v499 = vperm.slane %v496, 0
  %v500 = vsub.f32 %v499, %v20
  %v501 = vmul.f32 %v498, %v498
  %v502 = vadd.f32 %v492, %v501
  %v503 = vmul.f32 %v500, %v500
  %v504 = vadd.f32 %v494, %v503
  %v505 = vld [vmem:[%s16 + $0x7] sm:$0x1]
  %v506 = vld [vmem:[%s21 + $0x7] sm:$0x1]
  %v507 = vperm.slane %v505, 0
  %v508 = vsub.f32 %v507, %v17
  %v509 = vperm.slane %v506, 0
  %v510 = vsub.f32 %v509, %v22
  %v511 = vmul.f32 %v508, %v508
  %v512 = vadd.f32 %v502, %v511
  %v513 = vmul.f32 %v510, %v510
  %v514 = vadd.f32 %v504, %v513
  %v515 = vrsqrt.pop %v512
  %v516 = vmul.f32 %v515, %v512
  %v517 = vmul.f32 %v516, %v515
  %v518 = vmul.f32 0.5, %v517
  %v519 = vsub.f32 1.5, %v518
  %v520 = vmul.f32 %v515, %v519
  %v521 = vmul.f32 %v512, %v520
  %vm522 = vcmp.eq.f32.partialorder %v512, inf
  %v523 = vsel %vm522, %v512, %v521
  %vm524 = vcmp.eq.f32.partialorder %v512, 0.0
  %v525 = vand.u32 %v512, 2147483648
  %v526 = vsel %vm524, %v525, %v523
  %v527 = vrsqrt.pop %v514
  %v528 = vmul.f32 %v527, %v514
  %v529 = vmul.f32 %v528, %v527
  %v530 = vmul.f32 0.5, %v529
  %v531 = vsub.f32 1.5, %v530
  %v532 = vmul.f32 %v527, %v531
  %v533 = vmul.f32 %v514, %v532
  %vm534 = vcmp.eq.f32.partialorder %v514, inf
  %v535 = vsel %vm534, %v514, %v533
  %vm536 = vcmp.eq.f32.partialorder %v514, 0.0
  %v537 = vand.u32 %v514, 2147483648
  %v538 = vsel %vm536, %v537, %v535
  %v539 = vsub.f32 %v526, %v538
  %v540 = vand.u32 2147483647, %v539
  %541 = vadd.xlane.f32.xlu0 %v540
  %v542 = vpop.xlane.xlu0 %541
  %v543 = vrot.slane %v542, 4
  %v544 = vadd.f32 %v542, %v543
  %v545 = vrot.slane %v544, 2
  %v546 = vadd.f32 %v544, %v545
  %v547 = vrot.slane %v546, 1
  %v548 = vadd.f32 %v546, %v547
  %s549 = vtos %v548
  %s550 = sadd.f32 %s484, %s549
  %s551 = smul.f32 %s550, 0.5
  %s552 = sadd.f32 %s551, 0.0
  %v553 = vstv %s552
  %554 = vst [vmem:[%s2] sm:$0xff] %v553
  // Predicated region
  $region10: #{joint_bone_loss.1} parent=0 // pred_check
    _
  $region11: #{joint_bone_loss.1} parent=0 // pred_check_branch
    %556 = sbr.rel (0) target = $region13
  $region12: #{joint_bone_loss.1} parent=0 // pred_region
    _
  $region13: #{joint_bone_loss.1} parent=0 // pred_fallthru
    _
  // Predicated region
  $region14: #{joint_bone_loss.1} parent=0 // pred_check
    _
  $region15: #{joint_bone_loss.1} parent=0 // pred_check_branch
    %558 = sbr.rel (0) target = $region17
  $region16: #{joint_bone_loss.1} parent=0 // pred_region
    _
  $region17: #{joint_bone_loss.1} parent=0 // pred_fallthru
    _

</llo_original>
